<compile_context>
chip_gen: v6e
topology: v6e:2x2x1
jax: 0.10.0
libtpu: 0.0.40
codegen_flags: <defaults>
</compile_context>

<pallas_src>
import functools

import jax
import jax.numpy as jnp
from jax.experimental import pallas as pl
from jax.experimental.pallas import tpu as pltpu

_LANE = 128      # lane width: hidden dims padded to multiples of this
_SUBLANE = 8     # sublane granularity for the batch tile


def _round_up(n: int, m: int) -> int:
    return ((n + m - 1) // m) * m


# ---------------------------------------------------------------------------
# Fused kernel: one batch tile through the entire MLP.
# ---------------------------------------------------------------------------
def _fused_mlp_kernel(x_ref, *refs):
    """refs = (w1, b1, ..., wH, bH, w_last_row, b_last, o_ref)."""
    o_ref = refs[-1]
    wb = refs[:-1]
    n_hidden = (len(wb) - 2) // 2

    h = x_ref[...]                                    # (tm, n_char)
    for i in range(n_hidden):                         # unrolled at trace time
        w = wb[2 * i][...]                            # (din[_p], dout_p)
        b = wb[2 * i + 1][...]                        # (1, dout_p)
        h = jnp.dot(h, w, preferred_element_type=jnp.float32) + b
        h = jnp.maximum(h, jnp.float32(0.0))          # Dropout1d(eval)=id, then ReLU

    # Final Linear (Dout == 1): VPU/XLU row-reduction instead of an N=1 matmul.
    w_last = wb[-2][...]                              # (1, dlast_p)
    b_last = wb[-1][...]                              # (1, 1)
    y = jnp.sum(h * w_last, axis=-1, keepdims=True) + b_last
    o_ref[...] = y.astype(o_ref.dtype)


# ---------------------------------------------------------------------------
# Parameter preparation: pad ONLY hidden feature dims to multiples of 128.
# The first layer keeps its true K (= n_char) so the streamed x tile is not
# feature-padded; padded hidden units get bias 0 -> ReLU(0)=0 -> contribute 0.
# ---------------------------------------------------------------------------
def prepare_params(params):
    """params: list of (w(din,dout), b(dout,)); last layer has dout == 1.

    Returns a flat list [w1p, b1p, ..., wHp, bHp, w_last_row_p, b_last_11].
    """
    flat = []
    n = len(params)
    for i, (w, b) in enumerate(params):
        din, dout = w.shape
        din_p = din if i == 0 else _round_up(din, _LANE)
        if i < n - 1:
            dout_p = _round_up(dout, _LANE)
            wp = jnp.zeros((din_p, dout_p), w.dtype).at[:din, :dout].set(w)
            bp = jnp.zeros((1, dout_p), b.dtype).at[0, :dout].set(b)
        else:
            assert dout == 1, "final layer must map to a single output"
            wp = jnp.zeros((1, din_p), w.dtype).at[0, :din].set(w[:, 0])
            bp = b.reshape(1, 1)
        flat.extend([wp, bp])
    return flat


# ---------------------------------------------------------------------------
# Forward pass: single fused, batch-gridded pallas_call. No wrapper-side
# input copy/pad; `char` streams directly from HBM tile by tile.
# ---------------------------------------------------------------------------
@functools.partial(jax.jit, static_argnames=("tm",))
def network_forward(char, params, *, tm: int = 1024):
    """Replicates Network.forward (eval mode) with one fused Pallas kernel.

    tm: batch-tile rows. Rounded to a multiple of 8 and clamped so the grid
        has >= 2 steps whenever batch > 8 (keeps both v7x TCs busy).
    char may be float32 or bfloat16; accumulation is always f32.
    """
    batch, n_char = char.shape
    flat = prepare_params(params)

    # Validate / round tm to the f32 sublane multiple.
    tm = max(_SUBLANE, _round_up(int(tm), _SUBLANE))
    # Clamp so small/medium batches still split into >= 2 "parallel" tiles.
    tm = min(tm, max(_SUBLANE, _round_up(-(-batch // 2), _SUBLANE)))

    n_tiles = pl.cdiv(batch, tm)

    # Activation tile streams over the grid; weights/biases are resident blocks.
    in_specs = [pl.BlockSpec((tm, n_char), lambda i: (i, 0))]
    for a in flat:
        in_specs.append(pl.BlockSpec(a.shape, lambda i: (0, 0)))

    out = pl.pallas_call(
        _fused_mlp_kernel,
        out_shape=jax.ShapeDtypeStruct((batch, 1), char.dtype),
        grid=(n_tiles,),
        in_specs=in_specs,
        out_specs=pl.BlockSpec((tm, 1), lambda i: (i, 0)),
        compiler_params=pltpu.CompilerParams(
            dimension_semantics=("parallel",)),  # shard batch tiles across TCs (v7x)
    )(char, *flat)

    return out


# ---------------------------------------------------------------------------
# Deterministic init matching the module's layer shapes.
# ---------------------------------------------------------------------------
def init_params(key, n_char, hidden_layer_sizes):
    sizes = [n_char] + list(hidden_layer_sizes) + [1]
    params = []
    for i in range(len(sizes) - 1):
        din, dout = sizes[i], sizes[i + 1]
        key, kw, kb = jax.random.split(key, 3)
        bound = 1.0 / jnp.sqrt(jnp.float32(din))
        w = jax.random.uniform(kw, (din, dout), jnp.float32, -bound, bound)
        b = jax.random.uniform(kb, (dout,), jnp.float32, -bound, bound)
        params.append((w, b))
    return params


if __name__ == "__main__":
    # Small shapes consistent with the module: char is (batch, N_char).
    N_CHAR = 32
    HIDDEN = [64, 32]
    BATCH = 20          # not a multiple of the tile -> exercises ragged last tile

    key = jax.random.PRNGKey(0)
    key, kx = jax.random.split(key)
    char = jax.random.normal(kx, (BATCH, N_CHAR), dtype=jnp.float32)
    params = init_params(key, N_CHAR, HIDDEN)

    # Default tm clamps to 16 for this batch -> a 2-step "parallel" grid.
    out = network_forward(char, params)
    out = jax.block_until_ready(out)

    # Reference in plain JAX (eval-mode Dropout1d == identity).
    ref = char
    for i, (w, b) in enumerate(params):
        ref = ref @ w + b
        if i != len(params) - 1:
            ref = jnp.maximum(ref, 0.0)

    assert out.shape == (BATCH, 1), out.shape
    assert jnp.allclose(out, ref, atol=1e-4, rtol=1e-4), float(jnp.max(jnp.abs(out - ref)))
    print("KERNEL_OK")
</pallas_src>

<mosaic_0001>
module attributes {stable_mosaic.version = 11 : i64} {
  func.func @_fused_mlp_kernel(%arg0: i32, %arg1: memref<16x32xf32, #tpu.memory_space<vmem>>, %arg2: memref<32x128xf32, #tpu.memory_space<vmem>>, %arg3: memref<1x128xf32, #tpu.memory_space<vmem>>, %arg4: memref<128x128xf32, #tpu.memory_space<vmem>>, %arg5: memref<1x128xf32, #tpu.memory_space<vmem>>, %arg6: memref<1x128xf32, #tpu.memory_space<vmem>>, %arg7: memref<1x1xf32, #tpu.memory_space<vmem>>, %arg8: memref<16x1xf32, #tpu.memory_space<vmem>>) attributes {dimension_semantics = [#tpu.dimension_semantics<parallel>], iteration_bounds = array<i64: 2>, scalar_prefetch = 0 : i64, scratch_operands = 0 : i64, tpu.core_type = #tpu.core_type<tc>, window_params = [{transform_indices = @transform_0, window_bounds = array<i64: 16, 32>}, {pipeline_mode = #tpu.pipeline_mode<synchronous>, transform_indices = @transform_1, window_bounds = array<i64: 32, 128>}, {pipeline_mode = #tpu.pipeline_mode<synchronous>, transform_indices = @transform_2, window_bounds = array<i64: 1, 128>}, {pipeline_mode = #tpu.pipeline_mode<synchronous>, transform_indices = @transform_3, window_bounds = array<i64: 128, 128>}, {pipeline_mode = #tpu.pipeline_mode<synchronous>, transform_indices = @transform_4, window_bounds = array<i64: 1, 128>}, {pipeline_mode = #tpu.pipeline_mode<synchronous>, transform_indices = @transform_5, window_bounds = array<i64: 1, 128>}, {pipeline_mode = #tpu.pipeline_mode<synchronous>, transform_indices = @transform_6, window_bounds = array<i64: 1, 1>}, {transform_indices = @transform_7, window_bounds = array<i64: 16, 1>}]} {
    %c0 = arith.constant 0 : index
    %c0_0 = arith.constant 0 : index
    %0 = vector.load %arg1[%c0, %c0_0] : memref<16x32xf32, #tpu.memory_space<vmem>>, vector<16x32xf32>
    %c0_1 = arith.constant 0 : index
    %c0_2 = arith.constant 0 : index
    %1 = vector.load %arg2[%c0_1, %c0_2] : memref<32x128xf32, #tpu.memory_space<vmem>>, vector<32x128xf32>
    %c0_3 = arith.constant 0 : index
    %c0_4 = arith.constant 0 : index
    %2 = vector.load %arg3[%c0_3, %c0_4] : memref<1x128xf32, #tpu.memory_space<vmem>>, vector<1x128xf32>
    %cst = arith.constant dense<0.000000e+00> : vector<16x128xf32>
    %3 = tpu.matmul %0, %1, %cst {dimension_numbers = #tpu.dot_dimension_numbers<[1], [0], [0], [1], [0, 0, 1, 1], [], []>} : vector<16x32xf32>, vector<32x128xf32>, vector<16x128xf32> -> vector<16x128xf32>
    %4 = vector.broadcast %2 : vector<1x128xf32> to vector<16x128xf32>
    %5 = arith.addf %3, %4 : vector<16x128xf32>
    %cst_5 = arith.constant 0.000000e+00 : f32
    %6 = vector.broadcast %cst_5 : f32 to vector<16x128xf32>
    %7 = arith.maximumf %5, %6 : vector<16x128xf32>
    %c0_6 = arith.constant 0 : index
    %c0_7 = arith.constant 0 : index
    %8 = vector.load %arg4[%c0_6, %c0_7] : memref<128x128xf32, #tpu.memory_space<vmem>>, vector<128x128xf32>
    %c0_8 = arith.constant 0 : index
    %c0_9 = arith.constant 0 : index
    %9 = vector.load %arg5[%c0_8, %c0_9] : memref<1x128xf32, #tpu.memory_space<vmem>>, vector<1x128xf32>
    %cst_10 = arith.constant dense<0.000000e+00> : vector<16x128xf32>
    %10 = tpu.matmul %7, %8, %cst_10 {dimension_numbers = #tpu.dot_dimension_numbers<[1], [0], [0], [1], [0, 0, 1, 1], [], []>} : vector<16x128xf32>, vector<128x128xf32>, vector<16x128xf32> -> vector<16x128xf32>
    %11 = vector.broadcast %9 : vector<1x128xf32> to vector<16x128xf32>
    %12 = arith.addf %10, %11 : vector<16x128xf32>
    %cst_11 = arith.constant 0.000000e+00 : f32
    %13 = vector.broadcast %cst_11 : f32 to vector<16x128xf32>
    %14 = arith.maximumf %12, %13 : vector<16x128xf32>
    %c0_12 = arith.constant 0 : index
    %c0_13 = arith.constant 0 : index
    %15 = vector.load %arg6[%c0_12, %c0_13] : memref<1x128xf32, #tpu.memory_space<vmem>>, vector<1x128xf32>
    %c0_14 = arith.constant 0 : index
    %c0_15 = arith.constant 0 : index
    %16 = vector.load %arg7[%c0_14, %c0_15] : memref<1x1xf32, #tpu.memory_space<vmem>>, vector<1x1xf32>
    %17 = vector.broadcast %15 : vector<1x128xf32> to vector<16x128xf32>
    %18 = arith.mulf %14, %17 : vector<16x128xf32>
    %cst_16 = arith.constant dense<0.000000e+00> : vector<16xf32>
    %19 = vector.multi_reduction <add>, %18, %cst_16 [1] : vector<16x128xf32> to vector<16xf32>
    %20 = vector.shape_cast %19 : vector<16xf32> to vector<16x1xf32>
    %21 = vector.broadcast %16 : vector<1x1xf32> to vector<16x1xf32>
    %22 = arith.addf %20, %21 : vector<16x1xf32>
    %c0_17 = arith.constant 0 : index
    %c0_18 = arith.constant 0 : index
    %23 = vector.load %arg8[%c0_17, %c0_18] : memref<16x1xf32, #tpu.memory_space<vmem>>, vector<16x1xf32>
    tpu.vector_store %arg8[%c0_17, %c0_18], %22 {strides = array<i32>} : memref<16x1xf32, #tpu.memory_space<vmem>>, vector<16x1xf32>,
    return
  }
  func.func @transform_0(%arg0: i32) -> (i32, i32) {
    %c0_i32 = arith.constant 0 : i32
    %c0_i32_0 = arith.constant 0 : i32
    return %arg0, %c0_i32 : i32, i32
  }
  func.func @transform_1(%arg0: i32) -> (i32, i32) {
    %c0_i32 = arith.constant 0 : i32
    %c0_i32_0 = arith.constant 0 : i32
    %c0_i32_1 = arith.constant 0 : i32
    return %c0_i32, %c0_i32_0 : i32, i32
  }
  func.func @transform_2(%arg0: i32) -> (i32, i32) {
    %c0_i32 = arith.constant 0 : i32
    %c0_i32_0 = arith.constant 0 : i32
    %c0_i32_1 = arith.constant 0 : i32
    return %c0_i32, %c0_i32_0 : i32, i32
  }
  func.func @transform_3(%arg0: i32) -> (i32, i32) {
    %c0_i32 = arith.constant 0 : i32
    %c0_i32_0 = arith.constant 0 : i32
    %c0_i32_1 = arith.constant 0 : i32
    return %c0_i32, %c0_i32_0 : i32, i32
  }
  func.func @transform_4(%arg0: i32) -> (i32, i32) {
    %c0_i32 = arith.constant 0 : i32
    %c0_i32_0 = arith.constant 0 : i32
    %c0_i32_1 = arith.constant 0 : i32
    return %c0_i32, %c0_i32_0 : i32, i32
  }
  func.func @transform_5(%arg0: i32) -> (i32, i32) {
    %c0_i32 = arith.constant 0 : i32
    %c0_i32_0 = arith.constant 0 : i32
    %c0_i32_1 = arith.constant 0 : i32
    return %c0_i32, %c0_i32_0 : i32, i32
  }
  func.func @transform_6(%arg0: i32) -> (i32, i32) {
    %c0_i32 = arith.constant 0 : i32
    %c0_i32_0 = arith.constant 0 : i32
    %c0_i32_1 = arith.constant 0 : i32
    return %c0_i32, %c0_i32_0 : i32, i32
  }
  func.func @transform_7(%arg0: i32) -> (i32, i32) {
    %c0_i32 = arith.constant 0 : i32
    %c0_i32_0 = arith.constant 0 : i32
    return %arg0, %c0_i32 : i32, i32
  }
}

</mosaic_0001>

<llo_original>
// kernel: network_forward.1
$region0: #{network_forward.1}
  #allocation0 [shape = 'u32[]', space=smem, size = 0x4, offset = 0x4, fixed_abs, tag = 'smem constant byte address 0x4 - core index']
  #allocation1 [shape = 'u32[144,128]{1,0:T(1,128)}', space=vmem, size = 0x12000, scoped, tag = 'internal scratch']
  #allocation2 [shape = 'f32[1,1]{1,0:T(1,128)S(1)}', space=vmem, size = 0x200, scoped, tag = 'scoped memory for network_forward.1']
  %s0 = inlined_call_operand.vmem [shape: f32[20,32], index: 0, kind: input, shape index: {}]
  %s1 = inlined_call_operand.vmem [shape: f32[32,128], index: 1, kind: input, shape index: {}]
  %s2 = inlined_call_operand.vmem [shape: f32[1,128], index: 2, kind: input, shape index: {}]
  %s3 = inlined_call_operand.vmem [shape: f32[128,128], index: 3, kind: input, shape index: {}]
  %s4 = inlined_call_operand.vmem [shape: f32[1,128], index: 4, kind: input, shape index: {}]
  %s5 = inlined_call_operand.vmem [shape: f32[1,128], index: 5, kind: input, shape index: {}]
  %s6 = inlined_call_operand.<no memory space> [shape: f32[1,1], index: 6, kind: input, shape index: {}]
  %s7 = inlined_call_operand.vmem [shape: f32[20,1], index: 7, kind: output, shape index: {}]
  %s8 = sld [smem:[#allocation0]]
  $region109: #{network_forward.1} parent=0
    _
  %s10 = ssub.s32 1, %s8
  %s11 = scalar_select 0, %s10, %s8
  %v12 = vstv %s6
  %13 = vst [vmem:[#allocation2] sm:$0x1] %v12
  $region1: #{network_forward.1} parent=0
    #allocation3 [shape = 'u8[16384]{0}', space=vmem, size = 0x4000, scoped, tag = 'output window, operand 0']
    loop: start=0, step=1, limit=4
    $region2: #{network_forward.1} parent=1 // loop_pre_header
      _
    $region3: #{network_forward.1} parent=1 // loop_header
      %s15 = sphi 0, %s19
      %p16 = scmp.ge.s32.totalorder %s15, 4
      %s25 = sphi 0, %s27
      %s28 = sphi 0, %s25
      %s29 = sphi 0, %s28
      %s45 = sphi 0, %s29
      %s49 = sphi 0, %s49
      %s51 = sphi 0, %s49
      %s52 = sphi 0, %s51
      %s66 = sphi 0, %s52
      %s70 = sphi 0, %s70
      %s72 = sphi 0, %s70
      %s73 = sphi 0, %s72
      %s87 = sphi 0, %s73
      %s91 = sphi 0, %s91
      %s93 = sphi 0, %s91
      %s94 = sphi 0, %s93
      %s108 = sphi 0, %s94
      %s112 = sphi 0, %s112
      %s114 = sphi 0, %s112
      %s115 = sphi 0, %s114
      %s129 = sphi 0, %s115
      %s133 = sphi 0, %s133
      %s135 = sphi 0, %s133
      %s136 = sphi 0, %s135
      %s150 = sphi 0, %s136
      %s154 = sphi 0, %s154
      %s156 = sphi 0, %s154
      %s157 = sphi 0, %s156
      %s171 = sphi 0, %s157
      %s177 = sphi 0, %s179
      %s180 = sphi 0, %s177
      %s181 = sphi 0, %s180
      %s197 = sphi 0, %s181
    $region4: #{network_forward.1} parent=1 // loop_header_branch
      %18 = sbr.rel (%p16) target = $region8
    $region5: #{network_forward.1} parent=1 // loop_body
      %s20 = ssub.s32 %s15, 1
      %s21 = ssub.s32 %s15, 2
      %s22 = sadd.s32 %s15, 1
      %s23 = ssub.s32 %s15, %s22
      %p24 = scmp.eq.s32.totalorder %s23, 0
      %s26 = sadd.s32 %s25, 1
      %s27 = scalar_select %p24, %s25, %s26
      %p30 = pneg %p24
      %p31 = scmp.eq.s32.totalorder %s15, 1
      %p32 = por %p30, %p31
      %p33 = scmp.ne.s32.totalorder %s25, %s28
      %p34 = scmp.eq.s32.totalorder %s15, 0
      %p35 = por %p33, %p34
      %p36 = scmp.ne.s32.totalorder %s25, %s28
      %p37 = scmp.eq.s32.totalorder %s20, 1
      %p38 = por %p36, %p37
      %p39 = scmp.ne.s32.totalorder %s28, %s29
      %p40 = scmp.eq.s32.totalorder %s20, 0
      %p41 = por %p39, %p40
      %p42 = scmp.ne.s32.totalorder %s28, %s29
      %p43 = scmp.eq.s32.totalorder %s21, 1
      %p44 = por %p42, %p43
      %p46 = scmp.ne.s32.totalorder %s29, %s45
      %p47 = scmp.eq.s32.totalorder %s21, 0
      %p48 = por %p46, %p47
      %s50 = sadd.s32 %s49, 1
      %p53 = scmp.eq.s32.totalorder %s15, 1
      %p54 = scmp.ne.s32.totalorder %s49, %s51
      %p55 = scmp.eq.s32.totalorder %s15, 0
      %p56 = por %p54, %p55
      %p57 = scmp.ne.s32.totalorder %s49, %s51
      %p58 = scmp.eq.s32.totalorder %s20, 1
      %p59 = por %p57, %p58
      %p60 = scmp.ne.s32.totalorder %s51, %s52
      %p61 = scmp.eq.s32.totalorder %s20, 0
      %p62 = por %p60, %p61
      %p63 = scmp.ne.s32.totalorder %s51, %s52
      %p64 = scmp.eq.s32.totalorder %s21, 1
      %p65 = por %p63, %p64
      %p67 = scmp.ne.s32.totalorder %s52, %s66
      %p68 = scmp.eq.s32.totalorder %s21, 0
      %p69 = por %p67, %p68
      %s71 = sadd.s32 %s70, 1
      %p74 = scmp.eq.s32.totalorder %s15, 1
      %p75 = scmp.ne.s32.totalorder %s70, %s72
      %p76 = scmp.eq.s32.totalorder %s15, 0
      %p77 = por %p75, %p76
      %p78 = scmp.ne.s32.totalorder %s70, %s72
      %p79 = scmp.eq.s32.totalorder %s20, 1
      %p80 = por %p78, %p79
      %p81 = scmp.ne.s32.totalorder %s72, %s73
      %p82 = scmp.eq.s32.totalorder %s20, 0
      %p83 = por %p81, %p82
      %p84 = scmp.ne.s32.totalorder %s72, %s73
      %p85 = scmp.eq.s32.totalorder %s21, 1
      %p86 = por %p84, %p85
      %p88 = scmp.ne.s32.totalorder %s73, %s87
      %p89 = scmp.eq.s32.totalorder %s21, 0
      %p90 = por %p88, %p89
      %s92 = sadd.s32 %s91, 1
      %p95 = scmp.eq.s32.totalorder %s15, 1
      %p96 = scmp.ne.s32.totalorder %s91, %s93
      %p97 = scmp.eq.s32.totalorder %s15, 0
      %p98 = por %p96, %p97
      %p99 = scmp.ne.s32.totalorder %s91, %s93
      %p100 = scmp.eq.s32.totalorder %s20, 1
      %p101 = por %p99, %p100
      %p102 = scmp.ne.s32.totalorder %s93, %s94
      %p103 = scmp.eq.s32.totalorder %s20, 0
      %p104 = por %p102, %p103
      %p105 = scmp.ne.s32.totalorder %s93, %s94
      %p106 = scmp.eq.s32.totalorder %s21, 1
      %p107 = por %p105, %p106
      %p109 = scmp.ne.s32.totalorder %s94, %s108
      %p110 = scmp.eq.s32.totalorder %s21, 0
      %p111 = por %p109, %p110
      %s113 = sadd.s32 %s112, 1
      %p116 = scmp.eq.s32.totalorder %s15, 1
      %p117 = scmp.ne.s32.totalorder %s112, %s114
      %p118 = scmp.eq.s32.totalorder %s15, 0
      %p119 = por %p117, %p118
      %p120 = scmp.ne.s32.totalorder %s112, %s114
      %p121 = scmp.eq.s32.totalorder %s20, 1
      %p122 = por %p120, %p121
      %p123 = scmp.ne.s32.totalorder %s114, %s115
      %p124 = scmp.eq.s32.totalorder %s20, 0
      %p125 = por %p123, %p124
      %p126 = scmp.ne.s32.totalorder %s114, %s115
      %p127 = scmp.eq.s32.totalorder %s21, 1
      %p128 = por %p126, %p127
      %p130 = scmp.ne.s32.totalorder %s115, %s129
      %p131 = scmp.eq.s32.totalorder %s21, 0
      %p132 = por %p130, %p131
      %s134 = sadd.s32 %s133, 1
      %p137 = scmp.eq.s32.totalorder %s15, 1
      %p138 = scmp.ne.s32.totalorder %s133, %s135
      %p139 = scmp.eq.s32.totalorder %s15, 0
      %p140 = por %p138, %p139
      %p141 = scmp.ne.s32.totalorder %s133, %s135
      %p142 = scmp.eq.s32.totalorder %s20, 1
      %p143 = por %p141, %p142
      %p144 = scmp.ne.s32.totalorder %s135, %s136
      %p145 = scmp.eq.s32.totalorder %s20, 0
      %p146 = por %p144, %p145
      %p147 = scmp.ne.s32.totalorder %s135, %s136
      %p148 = scmp.eq.s32.totalorder %s21, 1
      %p149 = por %p147, %p148
      %p151 = scmp.ne.s32.totalorder %s136, %s150
      %p152 = scmp.eq.s32.totalorder %s21, 0
      %p153 = por %p151, %p152
      %s155 = sadd.s32 %s154, 1
      %p158 = scmp.eq.s32.totalorder %s15, 1
      %p159 = scmp.ne.s32.totalorder %s154, %s156
      %p160 = scmp.eq.s32.totalorder %s15, 0
      %p161 = por %p159, %p160
      %p162 = scmp.ne.s32.totalorder %s154, %s156
      %p163 = scmp.eq.s32.totalorder %s20, 1
      %p164 = por %p162, %p163
      %p165 = scmp.ne.s32.totalorder %s156, %s157
      %p166 = scmp.eq.s32.totalorder %s20, 0
      %p167 = por %p165, %p166
      %p168 = scmp.ne.s32.totalorder %s156, %s157
      %p169 = scmp.eq.s32.totalorder %s21, 1
      %p170 = por %p168, %p169
      %p172 = scmp.ne.s32.totalorder %s157, %s171
      %p173 = scmp.eq.s32.totalorder %s21, 0
      %p174 = por %p172, %p173
      %s175 = ssub.s32 %s15, %s22
      %p176 = scmp.eq.s32.totalorder %s175, 0
      %s178 = sadd.s32 %s177, 1
      %s179 = scalar_select %p176, %s177, %s178
      %p182 = pneg %p176
      %p183 = scmp.eq.s32.totalorder %s15, 1
      %p184 = por %p182, %p183
      %p185 = scmp.ne.s32.totalorder %s177, %s180
      %p186 = scmp.eq.s32.totalorder %s15, 0
      %p187 = por %p185, %p186
      %p188 = scmp.ne.s32.totalorder %s177, %s180
      %p189 = scmp.eq.s32.totalorder %s20, 1
      %p190 = por %p188, %p189
      %p191 = scmp.ne.s32.totalorder %s180, %s181
      %p192 = scmp.eq.s32.totalorder %s20, 0
      %p193 = por %p191, %p192
      %p194 = scmp.ne.s32.totalorder %s180, %s181
      %p195 = scmp.eq.s32.totalorder %s21, 1
      %p196 = por %p194, %p195
      %p198 = scmp.ne.s32.totalorder %s181, %s197
      %p199 = scmp.eq.s32.totalorder %s21, 0
      %p200 = por %p198, %p199
      %p201 = scmp.le.s32.totalorder 1, %s15
      %p202 = scmp.lt.s32.totalorder %s15, 3
      %p203 = pnand %p201, %p202
      %p204 = pneg %p203
      // Predicated region
      $region9: #{network_forward.1} parent=5 // pred_check
        _
      $region10: #{network_forward.1} parent=5 // pred_check_branch
        %206 = sbr.rel (%p203) target = $region12
      $region11: #{network_forward.1} parent=5 // pred_region
        %s207 = ssub.s32 %s15, 1
        // Predicated region
        $region13: #{network_forward.1} parent=11 // pred_check
          %p208 = pneg %p62
        $region14: #{network_forward.1} parent=11 // pred_check_branch
          %210 = sbr.rel (%p208) target = $region16
        $region15: #{network_forward.1} parent=11 // pred_region
          _
        $region16: #{network_forward.1} parent=11 // pred_fallthru
          _
        // Predicated region
        $region17: #{network_forward.1} parent=11 // pred_check
          %p211 = pneg %p83
        $region18: #{network_forward.1} parent=11 // pred_check_branch
          %213 = sbr.rel (%p211) target = $region20
        $region19: #{network_forward.1} parent=11 // pred_region
          _
        $region20: #{network_forward.1} parent=11 // pred_fallthru
          _
        // Predicated region
        $region21: #{network_forward.1} parent=11 // pred_check
          %p214 = pneg %p104
        $region22: #{network_forward.1} parent=11 // pred_check_branch
          %216 = sbr.rel (%p214) target = $region24
        $region23: #{network_forward.1} parent=11 // pred_region
          _
        $region24: #{network_forward.1} parent=11 // pred_fallthru
          _
        // Predicated region
        $region25: #{network_forward.1} parent=11 // pred_check
          %p217 = pneg %p125
        $region26: #{network_forward.1} parent=11 // pred_check_branch
          %219 = sbr.rel (%p217) target = $region28
        $region27: #{network_forward.1} parent=11 // pred_region
          _
        $region28: #{network_forward.1} parent=11 // pred_fallthru
          _
        // Predicated region
        $region29: #{network_forward.1} parent=11 // pred_check
          %p220 = pneg %p146
        $region30: #{network_forward.1} parent=11 // pred_check_branch
          %222 = sbr.rel (%p220) target = $region32
        $region31: #{network_forward.1} parent=11 // pred_region
          _
        $region32: #{network_forward.1} parent=11 // pred_fallthru
          _
        // Predicated region
        $region33: #{network_forward.1} parent=11 // pred_check
          %p223 = pneg %p167
        $region34: #{network_forward.1} parent=11 // pred_check_branch
          %225 = sbr.rel (%p223) target = $region36
        $region35: #{network_forward.1} parent=11 // pred_region
          _
        $region36: #{network_forward.1} parent=11 // pred_fallthru
          _
      $region12: #{network_forward.1} parent=5 // pred_fallthru
        _
      %p226 = scmp.lt.s32.totalorder %s15, 2
      // Predicated region
      $region37: #{network_forward.1} parent=5 // pred_check
        %p227 = pneg %p226
      $region38: #{network_forward.1} parent=5 // pred_check_branch
        %229 = sbr.rel (%p227) target = $region40
      $region39: #{network_forward.1} parent=5 // pred_region
        // Predicated region
        $region41: #{network_forward.1} parent=39 // pred_check
          %p230 = pneg %p35
        $region42: #{network_forward.1} parent=39 // pred_check_branch
          %232 = sbr.rel (%p230) target = $region44
        $region43: #{network_forward.1} parent=39 // pred_region
          %s233 = smul.u32 2, %s15
          %s234 = ssub.s32 3, %s233
          %p235 = scmp.lt.s32.totalorder %s234, 2
          %s236 = scalar_select %p235, %s234, 2
          %s237 = smul.u32 128, %s236
          %p238 = scmp.lt.s32.totalorder %s233, 2
          %s239 = scalar_select %p238, %s233, 2
          %s240 = smul.addr %s239, 8
          %s241 = scalar_lea.vmem %s0, %s240
          %s242 = smul.u32 2, %s15
          %s243 = ssub.s32 3, %s242
          %p244 = scmp.lt.s32.totalorder %s243, 2
          %s245 = scalar_select %p244, %s243, 2
          %s246 = smul.u32 128, %s245
        $region44: #{network_forward.1} parent=39 // pred_fallthru
          _
      $region40: #{network_forward.1} parent=5 // pred_fallthru
        _
      %p247 = scmp.le.s32.totalorder 1, %s15
      %p248 = scmp.lt.s32.totalorder %s15, 3
      %p249 = pnand %p247, %p248
      %p250 = pneg %p249
      // Predicated region
      $region45: #{network_forward.1} parent=5 // pred_check
        _
      $region46: #{network_forward.1} parent=5 // pred_check_branch
        %252 = sbr.rel (%p249) target = $region48
      $region47: #{network_forward.1} parent=5 // pred_region
        %s253 = ssub.s32 %s15, 1
        %s254 = smul.u32 2, %s20
        %s255 = ssub.s32 3, %s254
        %p256 = scmp.lt.s32.totalorder %s255, 2
        %s257 = scalar_select %p256, %s255, 2
        %s258 = smul.u32 128, %s257
        %p259 = scmp.lt.s32.totalorder %s254, 2
        %s260 = scalar_select %p259, %s254, 2
        %s261 = smul.addr %s260, 8
        %s262 = scalar_lea.vmem %s0, %s261
        %p263 = pneg %p41
        %p264 = pneg %p38
        %p265 = pneg %p62
        %p266 = pneg %p59
        %p267 = pneg %p83
        %p268 = pneg %p80
        %p269 = pneg %p104
        %p270 = pneg %p101
        %p271 = pneg %p125
        %p272 = pneg %p122
        %p273 = pneg %p146
        %p274 = pneg %p143
        %p275 = pneg %p167
        %p276 = pneg %p164
        %p277 = pneg %p193
        %p278 = pneg %p190
        %s279 = sand.u32 %s180, 1
        %s280 = sand.u32 %s180, 1
        %s281 = smul.addr %s280, 16
        %s282 = scalar_lea.vmem [#allocation3], %s281
        %s283 = smul.u32 2, %s20
        %s284 = ssub.s32 3, %s283
        %p285 = scmp.lt.s32.totalorder %s284, 2
        %s286 = scalar_select %p285, %s284, 2
        %s287 = smul.u32 128, %s286
        %p288 = scmp.lt.s32.totalorder %s283, 2
        %s289 = scalar_select %p288, %s283, 2
        %s290 = smul.addr %s289, 8
        %s291 = scalar_lea.vmem %s0, %s290
        %s292 = smul.u32 2, %s20
        %s293 = ssub.s32 3, %s292
        %p294 = scmp.lt.s32.totalorder %s293, 2
        %s295 = scalar_select %p294, %s293, 2
        %s296 = smul.u32 128, %s295
        %s297 = smul.u32 2, %s20
        %s298 = ssub.s32 3, %s297
        %p299 = scmp.lt.s32.totalorder %s298, 2
        %s300 = scalar_select %p299, %s298, 2
        %s301 = smul.u32 128, %s300
        %v302 = vld [vmem:[%s291] sm:$0xff]
        %v303 = vld [vmem:[%s291 + $0x8] sm:$0xff]
        %v304 = vld [vmem:[%s1] sm:$0xff]
        %v305 = vld [vmem:[%s1 + $0x8] sm:$0xff]
        %v306 = vld [vmem:[%s1 + $0x10] sm:$0xff]
        %v307 = vld [vmem:[%s1 + $0x18] sm:$0xff]
        %v308 = vld [vmem:[%s2] sm:$0x1]
        %v310 = vlaneseq
        %v311 = vshrl.u32 %v310, 7
        %v312 = vsub.s32 0, %v311
        %v313 = vrot.slane %v308, %v312
        %vm315 = vcmask 261120
        %v317 = vsel %vm315, %v302, 0
        %v320 = vsel %vm315, %v303, 0
        %322 = vmatprep.subr.mxu0 0.0
        %323 = vmatpush1.msra.mxu0 0.0
        %324 = vmatprep.subr.mxu0 0.0
        %325 = vmatpush1.msra.mxu0 0.0
        %326 = vmatprep.subr.mxu0 0.0
        %327 = vmatpush1.msra.mxu0 0.0
        %328 = vmatprep.subr.mxu0 0.0
        %329 = vmatpush1.msra.mxu0 0.0
        %330 = vmatprep.subr.mxu0 0.0
        %331 = vmatpush1.msra.mxu0 0.0
        %332 = vmatprep.subr.mxu0 0.0
        %333 = vmatpush1.msra.mxu0 0.0
        %334 = vmatprep.subr.mxu0 0.0
        %335 = vmatpush1.msra.mxu0 0.0
        %336 = vmatprep.subr.mxu0 0.0
        %337 = vmatpush1.msra.mxu0 0.0
        %338 = vmatprep.subr.mxu0 0.0
        %339 = vmatpush1.msra.mxu0 0.0
        %340 = vmatprep.subr.mxu0 0.0
        %341 = vmatpush1.msra.mxu0 0.0
        %342 = vmatprep.subr.mxu0 0.0
        %343 = vmatpush1.msra.mxu0 0.0
        %344 = vmatprep.subr.mxu0 0.0
        %345 = vmatpush1.msra.mxu0 0.0
        %346 = vmatprep.subr.mxu0 0.0
        %347 = vmatpush1.msra.mxu0 %v307
        %348 = vmatprep.subr.mxu0 0.0
        %349 = vmatpush1.msra.mxu0 %v306
        %350 = vmatprep.subr.mxu0 0.0
        %351 = vmatpush1.msra.mxu0 %v305
        %352 = vmatprep.subr.mxu0 0.0
        %353 = vmatpush1.msra.mxu0 %v304
        %354 = vmatprep.subr.mxu0 0.0
        %355 = vmatpush2.msra.mxu0 0.0
        %356 = vmatprep.subr.mxu0 0.0
        %357 = vmatpush2.msra.mxu0 0.0
        %358 = vmatprep.subr.mxu0 0.0
        %359 = vmatpush2.msra.mxu0 0.0
        %360 = vmatprep.subr.mxu0 0.0
        %361 = vmatpush2.msra.mxu0 0.0
        %362 = vmatprep.subr.mxu0 0.0
        %363 = vmatpush2.msra.mxu0 0.0
        %364 = vmatprep.subr.mxu0 0.0
        %365 = vmatpush2.msra.mxu0 0.0
        %366 = vmatprep.subr.mxu0 0.0
        %367 = vmatpush2.msra.mxu0 0.0
        %368 = vmatprep.subr.mxu0 0.0
        %369 = vmatpush2.msra.mxu0 0.0
        %370 = vmatprep.subr.mxu0 0.0
        %371 = vmatpush2.msra.mxu0 0.0
        %372 = vmatprep.subr.mxu0 0.0
        %373 = vmatpush2.msra.mxu0 0.0
        %374 = vmatprep.subr.mxu0 0.0
        %375 = vmatpush2.msra.mxu0 0.0
        %376 = vmatprep.subr.mxu0 0.0
        %377 = vmatpush2.msra.mxu0 0.0
        %378 = vmatprep.subr.mxu0 0.0
        %379 = vmatpush2.msra.mxu0 0.0
        %380 = vmatprep.subr.mxu0 0.0
        %381 = vmatpush2.msra.mxu0 0.0
        %382 = vmatprep.subr.mxu0 0.0
        %383 = vmatpush2.msra.mxu0 0.0
        %384 = vmatprep.subr.mxu0 0.0
        %385 = vmatpush2.msra.mxu0 0.0
        %386 = vmatprep.mubr.f32.mxu0 0.0
        %387 = vmatmul.mubr.f32.gmra.mxu0 %v317
        %v388 = vpop.f32.mrf.mxu0
        %v389 = vadd.f32 %v313, %v388
        %v390 = vpop.f32.mrf.mxu0
        %391 = vmatprep.mubr.f32.mxu0 0.0
        %392 = vmatmul.mubr.f32.gmra.mxu0 %v320
        %v393 = vpop.f32.mrf.mxu0
        %v394 = vadd.f32 %v313, %v393
        %v395 = vpop.f32.mrf.mxu0
        %396 = vdwg.mxu0
        %v397 = vmax.f32 %v389, 0.0
        %v398 = vmax.f32 %v394, 0.0
        %v399 = vld [vmem:[%s3] sm:$0xff]
        %v400 = vld [vmem:[%s3 + $0x8] sm:$0xff]
        %v401 = vld [vmem:[%s3 + $0x10] sm:$0xff]
        %v402 = vld [vmem:[%s3 + $0x18] sm:$0xff]
        %v403 = vld [vmem:[%s3 + $0x20] sm:$0xff]
        %v404 = vld [vmem:[%s3 + $0x28] sm:$0xff]
        %v405 = vld [vmem:[%s3 + $0x30] sm:$0xff]
        %v406 = vld [vmem:[%s3 + $0x38] sm:$0xff]
        %v407 = vld [vmem:[%s3 + $0x40] sm:$0xff]
        %v408 = vld [vmem:[%s3 + $0x48] sm:$0xff]
        %v409 = vld [vmem:[%s3 + $0x50] sm:$0xff]
        %v410 = vld [vmem:[%s3 + $0x58] sm:$0xff]
        %v411 = vld [vmem:[%s3 + $0x60] sm:$0xff]
        %v412 = vld [vmem:[%s3 + $0x68] sm:$0xff]
        %v413 = vld [vmem:[%s3 + $0x70] sm:$0xff]
        %v414 = vld [vmem:[%s3 + $0x78] sm:$0xff]
        %v415 = vld [vmem:[%s4] sm:$0x1]
        %v417 = vlaneseq
        %v418 = vshrl.u32 %v417, 7
        %v419 = vsub.s32 0, %v418
        %v420 = vrot.slane %v415, %v419
        %422 = vmatprep.subr.mxu0 0.0
        %423 = vmatpush1.msra.mxu0 %v414
        %424 = vmatprep.subr.mxu0 0.0
        %425 = vmatpush1.msra.mxu0 %v413
        %426 = vmatprep.subr.mxu0 0.0
        %427 = vmatpush1.msra.mxu0 %v412
        %428 = vmatprep.subr.mxu0 0.0
        %429 = vmatpush1.msra.mxu0 %v411
        %430 = vmatprep.subr.mxu0 0.0
        %431 = vmatpush1.msra.mxu0 %v410
        %432 = vmatprep.subr.mxu0 0.0
        %433 = vmatpush1.msra.mxu0 %v409
        %434 = vmatprep.subr.mxu0 0.0
        %435 = vmatpush1.msra.mxu0 %v408
        %436 = vmatprep.subr.mxu0 0.0
        %437 = vmatpush1.msra.mxu0 %v407
        %438 = vmatprep.subr.mxu0 0.0
        %439 = vmatpush1.msra.mxu0 %v406
        %440 = vmatprep.subr.mxu0 0.0
        %441 = vmatpush1.msra.mxu0 %v405
        %442 = vmatprep.subr.mxu0 0.0
        %443 = vmatpush1.msra.mxu0 %v404
        %444 = vmatprep.subr.mxu0 0.0
        %445 = vmatpush1.msra.mxu0 %v403
        %446 = vmatprep.subr.mxu0 0.0
        %447 = vmatpush1.msra.mxu0 %v402
        %448 = vmatprep.subr.mxu0 0.0
        %449 = vmatpush1.msra.mxu0 %v401
        %450 = vmatprep.subr.mxu0 0.0
        %451 = vmatpush1.msra.mxu0 %v400
        %452 = vmatprep.subr.mxu0 0.0
        %453 = vmatpush1.msra.mxu0 %v399
        %454 = vmatprep.subr.mxu0 0.0
        %455 = vmatpush2.msra.mxu0 0.0
        %456 = vmatprep.subr.mxu0 0.0
        %457 = vmatpush2.msra.mxu0 0.0
        %458 = vmatprep.subr.mxu0 0.0
        %459 = vmatpush2.msra.mxu0 0.0
        %460 = vmatprep.subr.mxu0 0.0
        %461 = vmatpush2.msra.mxu0 0.0
        %462 = vmatprep.subr.mxu0 0.0
        %463 = vmatpush2.msra.mxu0 0.0
        %464 = vmatprep.subr.mxu0 0.0
        %465 = vmatpush2.msra.mxu0 0.0
        %466 = vmatprep.subr.mxu0 0.0
        %467 = vmatpush2.msra.mxu0 0.0
        %468 = vmatprep.subr.mxu0 0.0
        %469 = vmatpush2.msra.mxu0 0.0
        %470 = vmatprep.subr.mxu0 0.0
        %471 = vmatpush2.msra.mxu0 0.0
        %472 = vmatprep.subr.mxu0 0.0
        %473 = vmatpush2.msra.mxu0 0.0
        %474 = vmatprep.subr.mxu0 0.0
        %475 = vmatpush2.msra.mxu0 0.0
        %476 = vmatprep.subr.mxu0 0.0
        %477 = vmatpush2.msra.mxu0 0.0
        %478 = vmatprep.subr.mxu0 0.0
        %479 = vmatpush2.msra.mxu0 0.0
        %480 = vmatprep.subr.mxu0 0.0
        %481 = vmatpush2.msra.mxu0 0.0
        %482 = vmatprep.subr.mxu0 0.0
        %483 = vmatpush2.msra.mxu0 0.0
        %484 = vmatprep.subr.mxu0 0.0
        %485 = vmatpush2.msra.mxu0 0.0
        %486 = vmatprep.mubr.f32.mxu0 0.0
        %487 = vmatmul.mubr.f32.gmra.mxu0 %v397
        %v488 = vpop.f32.mrf.mxu0
        %v489 = vadd.f32 %v420, %v488
        %v490 = vpop.f32.mrf.mxu0
        %491 = vmatprep.mubr.f32.mxu0 0.0
        %492 = vmatmul.mubr.f32.gmra.mxu0 %v398
        %v493 = vpop.f32.mrf.mxu0
        %v494 = vadd.f32 %v420, %v493
        %v495 = vpop.f32.mrf.mxu0
        %496 = vdwg.mxu0
        %v497 = vmax.f32 %v489, 0.0
        %v498 = vmax.f32 %v494, 0.0
        %v499 = vld [vmem:[%s5] sm:$0x1]
        %v500 = vld [vmem:[#allocation2] sm:$0x1]
        %v502 = vlaneseq
        %v503 = vshrl.u32 %v502, 7
        %v504 = vsub.s32 0, %v503
        %v505 = vrot.slane %v499, %v504
        %v507 = vmul.f32 %v497, %v505
        %v508 = vmul.f32 %v498, %v505
        %509 = vadd.xlane.f32.xlu0 %v507
        %v510 = vpop.xlane.xlu0 %509
        %511 = vadd.xlane.f32.xlu0 %v508
        %v512 = vpop.xlane.xlu0 %511
        %v514 = vlaneseq
        %v515 = vshrl.u32 %v514, 7
        %v516 = vsub.s32 0, %v515
        %v517 = vrot.slane %v500, %v516
        %v519 = vadd.f32 %v510, %v517
        %v520 = vadd.f32 %v512, %v517
        %vm521 = vcmask 7168
        %522 = vst.msk [vmem:[%s282] sm:$0xff] %vm521, %v519
        %523 = vst.msk [vmem:[%s282 + $0x8] sm:$0xff] %vm521, %v520
        %s524 = sand.u32 %s180, 1
        %s525 = sand.u32 %s180, 1
        %s526 = smul.addr %s525, 16
        %s527 = scalar_lea.vmem [#allocation3], %s526
        // Predicated region
        $region49: #{network_forward.1} parent=47 // pred_check
          %p528 = pneg %p190
        $region50: #{network_forward.1} parent=47 // pred_check_branch
          %530 = sbr.rel (%p528) target = $region52
        $region51: #{network_forward.1} parent=47 // pred_region
          %s531 = smul.u32 2, %s20
          %s532 = ssub.s32 3, %s531
          %p533 = scmp.lt.s32.totalorder %s532, 2
          %s534 = scalar_select %p533, %s532, 2
          %s535 = smul.u32 128, %s534
          %p536 = scmp.ne.s32.totalorder 0, %s535
          %s537 = smul.addr %s531, 8
          %s538 = scalar_lea.vmem %s7, %s537
          // Predicated region
          $region53: #{network_forward.1} parent=51 // pred_check
            %p539 = pneg %p536
          $region54: #{network_forward.1} parent=51 // pred_check_branch
            %541 = sbr.rel (%p539) target = $region56
          $region55: #{network_forward.1} parent=51 // pred_region
            // Predicated region
            $region57: #{network_forward.1} parent=55 // pred_check
              _
            $region58: #{network_forward.1} parent=55 // pred_check_branch
              %543 = sbr.rel (0) target = $region60
            $region59: #{network_forward.1} parent=55 // pred_region
              // Predicated region
              $region79: #{network_forward.1} parent=59 // pred_check
                _
              $region80: #{network_forward.1} parent=59 // pred_check_branch
                %595 = sbr.rel (0) target = $region82
              $region81: #{network_forward.1} parent=59 // pred_region
                %s596 = sshrl.u32 %s534, 1
                // While loop
                $region83: #{network_forward.1} parent=81 // loop_pre_header
                  _
                $region84: #{network_forward.1} parent=81 // loop_header
                  %s598 = sphi 0, %s600
                  %p599 = scmp.ge.s32.totalorder %s598, %s596
                  %s603 = sphi 0, %s612
                  %s604 = sphi %s527, %s615
                  %s605 = sphi %s538, %s616
                $region85: #{network_forward.1} parent=81 // loop_header_branch
                  %602 = sbr.rel (%p599) target = $region89
                $region86: #{network_forward.1} parent=81 // loop_body
                  %v606 = vld [vmem:[%s604] sm:$0xff]
                  %607 = vst [vmem:[%s605] sm:$0xff] %v606
                  %v608 = vld [vmem:[%s604 + $0x8] sm:$0xff]
                  %609 = vst [vmem:[%s605 + $0x8] sm:$0xff] %v608
                  %s610 = sadd.s32 1, %s603
                  %p611 = scmp.ge.s32.totalorder %s610, %s596
                  %s612 = scalar_select %p611, 0, %s610
                  %s613 = smul.u32 %s612, 16
                  %s614 = smul.u32 %s612, 16
                  %s615 = scalar_lea.vmem %s527, %s613 [#allocation3]
                  %s616 = scalar_lea.vmem %s538, %s614
                $region87: #{network_forward.1} parent=81 // loop_footer
                  %s600 = sadd.s32 %s598, 1
                $region88: #{network_forward.1} parent=81 // loop_footer_branch
                  %597 = sbr.rel target = $region84
                $region89: #{network_forward.1} parent=81 // loop_exit
                  _
                %s617 = sshrl.u32 %s534, 1
                %s618 = sand.u32 %s534, 1
                %s619 = smul.u32 %s617, 2
                %s620 = smul.u32 8, %s619
                %s621 = scalar_lea.vmem %s527, %s620 [#allocation3]
                %s622 = smul.u32 8, %s619
                %s623 = scalar_lea.vmem %s538, %s622
                // While loop
                $region90: #{network_forward.1} parent=81 // loop_pre_header
                  _
                $region91: #{network_forward.1} parent=81 // loop_header
                  %s625 = sphi 0, %s627
                  %p626 = scmp.ge.s32.totalorder %s625, %s618
                  %s630 = sphi 0, %s637
                  %s631 = sphi %s621, %s640
                  %s632 = sphi %s623, %s641
                $region92: #{network_forward.1} parent=81 // loop_header_branch
                  %629 = sbr.rel (%p626) target = $region96
                $region93: #{network_forward.1} parent=81 // loop_body
                  %v633 = vld [vmem:[%s631] sm:$0xff]
                  %634 = vst [vmem:[%s632] sm:$0xff] %v633
                  %s635 = sadd.s32 1, %s630
                  %p636 = scmp.ge.s32.totalorder %s635, %s618
                  %s637 = scalar_select %p636, 0, %s635
                  %s638 = smul.u32 %s637, 8
                  %s639 = smul.u32 %s637, 8
                  %s640 = scalar_lea.vmem %s621, %s638 [#allocation3]
                  %s641 = scalar_lea.vmem %s623, %s639
                $region94: #{network_forward.1} parent=81 // loop_footer
                  %s627 = sadd.s32 %s625, 1
                $region95: #{network_forward.1} parent=81 // loop_footer_branch
                  %624 = sbr.rel target = $region91
                $region96: #{network_forward.1} parent=81 // loop_exit
                  _
              $region82: #{network_forward.1} parent=59 // pred_fallthru
                _
              // Predicated region
              $region97: #{network_forward.1} parent=59 // pred_check
                _
              $region98: #{network_forward.1} parent=59 // pred_check_branch
                %643 = sbr.rel target = $region100
              $region99: #{network_forward.1} parent=59 // pred_region
                _
              $region100: #{network_forward.1} parent=59 // pred_fallthru
                _
            $region60: #{network_forward.1} parent=55 // pred_fallthru
              _
            // Predicated region
            $region61: #{network_forward.1} parent=55 // pred_check
              _
            $region62: #{network_forward.1} parent=55 // pred_check_branch
              %545 = sbr.rel target = $region64
            $region63: #{network_forward.1} parent=55 // pred_region
              %s547 = ssub.s32 256, 1
              %s548 = sshrl.u32 %s534, 1
              // While loop
              $region65: #{network_forward.1} parent=63 // loop_pre_header
                _
              $region66: #{network_forward.1} parent=63 // loop_header
                %s550 = sphi 0, %s552
                %p551 = scmp.ge.s32.totalorder %s550, %s548
                %s555 = sphi 0, %s564
                %s556 = sphi %s527, %s567
                %s557 = sphi %s538, %s568
              $region67: #{network_forward.1} parent=63 // loop_header_branch
                %554 = sbr.rel (%p551) target = $region71
              $region68: #{network_forward.1} parent=63 // loop_body
                %v558 = vld [vmem:[%s556] sm:%s547]
                %559 = vst [vmem:[%s557] sm:%s547] %v558
                %v560 = vld [vmem:[%s556 + $0x8] sm:%s547]
                %561 = vst [vmem:[%s557 + $0x8] sm:%s547] %v560
                %s562 = sadd.s32 1, %s555
                %p563 = scmp.ge.s32.totalorder %s562, %s548
                %s564 = scalar_select %p563, 0, %s562
                %s565 = smul.u32 %s564, 16
                %s566 = smul.u32 %s564, 16
                %s567 = scalar_lea.vmem %s527, %s565 [#allocation3]
                %s568 = scalar_lea.vmem %s538, %s566
              $region69: #{network_forward.1} parent=63 // loop_footer
                %s552 = sadd.s32 %s550, 1
              $region70: #{network_forward.1} parent=63 // loop_footer_branch
                %549 = sbr.rel target = $region66
              $region71: #{network_forward.1} parent=63 // loop_exit
                _
              %s569 = sshrl.u32 %s534, 1
              %s570 = sand.u32 %s534, 1
              %s571 = smul.u32 %s569, 2
              %s572 = smul.u32 8, %s571
              %s573 = scalar_lea.vmem %s527, %s572 [#allocation3]
              %s574 = smul.u32 8, %s571
              %s575 = scalar_lea.vmem %s538, %s574
              // While loop
              $region72: #{network_forward.1} parent=63 // loop_pre_header
                _
              $region73: #{network_forward.1} parent=63 // loop_header
                %s577 = sphi 0, %s579
                %p578 = scmp.ge.s32.totalorder %s577, %s570
                %s582 = sphi 0, %s589
                %s583 = sphi %s573, %s592
                %s584 = sphi %s575, %s593
              $region74: #{network_forward.1} parent=63 // loop_header_branch
                %581 = sbr.rel (%p578) target = $region78
              $region75: #{network_forward.1} parent=63 // loop_body
                %v585 = vld [vmem:[%s583] sm:%s547]
                %586 = vst [vmem:[%s584] sm:%s547] %v585
                %s587 = sadd.s32 1, %s582
                %p588 = scmp.ge.s32.totalorder %s587, %s570
                %s589 = scalar_select %p588, 0, %s587
                %s590 = smul.u32 %s589, 8
                %s591 = smul.u32 %s589, 8
                %s592 = scalar_lea.vmem %s573, %s590 [#allocation3]
                %s593 = scalar_lea.vmem %s575, %s591
              $region76: #{network_forward.1} parent=63 // loop_footer
                %s579 = sadd.s32 %s577, 1
              $region77: #{network_forward.1} parent=63 // loop_footer_branch
                %576 = sbr.rel target = $region73
              $region78: #{network_forward.1} parent=63 // loop_exit
                _
            $region64: #{network_forward.1} parent=55 // pred_fallthru
              _
          $region56: #{network_forward.1} parent=51 // pred_fallthru
            _
          %644 = vnop
        $region52: #{network_forward.1} parent=47 // pred_fallthru
          _
      $region48: #{network_forward.1} parent=5 // pred_fallthru
        _
      %p645 = scmp.le.s32.totalorder 2, %s15
      // Predicated region
      $region101: #{network_forward.1} parent=5 // pred_check
        %p646 = pneg %p645
      $region102: #{network_forward.1} parent=5 // pred_check_branch
        %648 = sbr.rel (%p646) target = $region104
      $region103: #{network_forward.1} parent=5 // pred_region
        %s649 = ssub.s32 %s15, 2
        // Predicated region
        $region105: #{network_forward.1} parent=103 // pred_check
          %p650 = pneg %p196
        $region106: #{network_forward.1} parent=103 // pred_check_branch
          %652 = sbr.rel (%p650) target = $region108
        $region107: #{network_forward.1} parent=103 // pred_region
          %s653 = sand.u32 %s181, 1
          %s654 = sand.u32 %s181, 1
          %s655 = smul.addr %s654, 16
          %s656 = scalar_lea.vmem [#allocation3], %s655
        $region108: #{network_forward.1} parent=103 // pred_fallthru
          _
      $region104: #{network_forward.1} parent=5 // pred_fallthru
        _
    $region6: #{network_forward.1} parent=1 // loop_footer
      %s19 = sadd.s32 1, %s15
    $region7: #{network_forward.1} parent=1 // loop_footer_branch
      %14 = sbr.rel target = $region3
    $region8: #{network_forward.1} parent=1 // loop_exit
      _

</llo_original>
